<compile_context>
chip_gen: v5e
topology: v5e:2x2
jax: 0.10.0
libtpu: 0.0.40
codegen_flags: <defaults>
</compile_context>

<pallas_src>
import functools

import jax
import jax.numpy as jnp
from jax.experimental import pallas as pl
from jax.experimental.pallas import tpu as pltpu


def _attention_block_kernel(x_ref, w_ref, y_ref, *, num_seq, d_in, d_out):
    # x_ref : (TB, S*D_in)                     VMEM, lane-dense
    # w_ref : (S*D_in, S*D_in + S*D_out)       VMEM, packed block-diagonal weights
    # y_ref : (TB, D_out)                      VMEM
    s_din = num_seq * d_in

    x = x_ref[...]                                                    # (TB, S*D_in)
    # One lane-dense MXU pass:
    #   xw = [ x_0 M_0 | ... | x_{S-1} M_{S-1} | v_0 | ... | v_{S-1} ]
    xw = jnp.dot(x, w_ref[...], preferred_element_type=jnp.float32)   # (TB, S*(D_in+D_out))

    # score_i = rowsum(x_i * (x_i M_i)) == q_i . k_i   (p is full-lane-dense)
    p = x.astype(jnp.float32) * xw[:, :s_din]                         # (TB, S*D_in)
    scores = []
    ssq = None
    for i in range(num_seq):                                          # S tiny & static -> unroll
        s_i = jnp.sum(p[:, i * d_in:(i + 1) * d_in], axis=1, keepdims=True)   # (TB, 1)
        scores.append(s_i)
        ssq = s_i * s_i if ssq is None else ssq + s_i * s_i

    inv_norm = jax.lax.rsqrt(ssq)                                     # (TB, 1), EUP

    # y = sum_i (score_i / ||scores||) * v_i, streaming v_i from the packed output.
    y = jnp.zeros((x_ref.shape[0], d_out), dtype=jnp.float32)
    for i in range(num_seq):
        v_i = xw[:, s_din + i * d_out: s_din + (i + 1) * d_out]        # (TB, D_out)
        y = y + (scores[i] * inv_norm) * v_i
    y_ref[...] = y.astype(y_ref.dtype)


def _pack_weights(wq, wk, wv):
    """Pack [blockdiag(Wq_i @ Wk_i^T) | blockdiag(Wv_i)] -> (S*D_in, S*(D_in+D_out))."""
    num_seq, d_in, d_out = wq.shape
    m = jnp.einsum("sde,sfe->sdf", wq, wk)            # M_i = Wq_i @ Wk_i^T, (S, D_in, D_in)
    w = jnp.zeros((num_seq * d_in, num_seq * (d_in + d_out)), dtype=jnp.float32)
    for i in range(num_seq):
        w = w.at[i * d_in:(i + 1) * d_in, i * d_in:(i + 1) * d_in].set(m[i])
        w = w.at[i * d_in:(i + 1) * d_in,
                 num_seq * d_in + i * d_out: num_seq * d_in + (i + 1) * d_out].set(wv[i])
    return w


def _default_batch_tile(b):
    # ~0.5-1 MiB x-tiles: enough grid steps to pipeline DMA / use both v7x cores,
    # small enough for v7x's 32 MiB scoped VMEM. Small batches run as one tile.
    max_tile = 2048
    if b <= max_tile:
        return b
    for tb in range(max_tile - max_tile % 8, 7, -8):   # largest multiple-of-8 divisor
        if b % tb == 0:
            return tb
    return b                                           # fallback: single full-batch tile


@functools.partial(jax.jit, static_argnames=("batch_tile",))
def attention_block(x, wq, wk, wv, *, batch_tile=None):
    """x: (B, num_seq * input_dims); wq/wk/wv: (num_seq, input_dims, output_dims)."""
    num_seq, d_in, d_out = wq.shape
    b, feat = x.shape
    assert feat == num_seq * d_in

    tb = _default_batch_tile(b) if batch_tile is None else batch_tile
    assert b % tb == 0, "batch_tile must divide batch"
    assert tb == b or tb % 8 == 0, "batch_tile must be a multiple of 8 (f32 sublane)"

    w_packed = _pack_weights(wq, wk, wv)               # (S*D_in, S*(D_in+D_out))
    packed_n = w_packed.shape[1]

    kernel = functools.partial(_attention_block_kernel,
                               num_seq=num_seq, d_in=d_in, d_out=d_out)
    return pl.pallas_call(
        kernel,
        out_shape=jax.ShapeDtypeStruct((b, d_out), x.dtype),
        grid_spec=pltpu.PrefetchScalarGridSpec(
            num_scalar_prefetch=0,
            grid=(b // tb,),
            in_specs=[
                # x kept 2-D and lane-dense; last dim == full array dim.
                pl.BlockSpec((tb, feat), lambda i: (i, 0)),
                # packed weights: constant block across the grid.
                pl.BlockSpec((num_seq * d_in, packed_n), lambda i: (0, 0)),
            ],
            out_specs=pl.BlockSpec((tb, d_out), lambda i: (i, 0)),
        ),
        compiler_params=pltpu.CompilerParams(
            dimension_semantics=("parallel",),
        ),
    )(x, w_packed)


def attention_block_ref(x, wq, wk, wv):
    num_seq, d_in, d_out = wq.shape
    b = x.shape[0]
    x3 = x.reshape(b, num_seq, d_in)
    q = jnp.einsum("bsd,sde->bse", x3, wq)
    k = jnp.einsum("bsd,sde->bse", x3, wk)
    v = jnp.einsum("bsd,sde->bse", x3, wv)
    scores = jnp.sum(q * k, axis=-1)                               # (B, S)
    weights = scores / jnp.linalg.norm(scores, axis=1, keepdims=True)
    return jnp.einsum("bs,bse->be", weights, v)


if __name__ == "__main__":
    # Small shapes consistent with the module: num_seq=4, input_dims=32, output_dims=32
    num_seq, input_dims, output_dims = 4, 32, 32

    key = jax.random.PRNGKey(0)
    kx, kq, kk, kv, kx2 = jax.random.split(key, 5)
    wq = jax.random.normal(kq, (num_seq, input_dims, output_dims), dtype=jnp.float32)
    wk = jax.random.normal(kk, (num_seq, input_dims, output_dims), dtype=jnp.float32)
    wv = jax.random.normal(kv, (num_seq, input_dims, output_dims), dtype=jnp.float32)

    # Case 1: tiny batch, single grid step.
    x = jax.random.normal(kx, (8, num_seq * input_dims), dtype=jnp.float32)
    y = attention_block(x, wq, wk, wv)
    jax.block_until_ready(y)
    y_ref = attention_block_ref(x, wq, wk, wv)
    assert y.shape == (8, output_dims)
    assert jnp.allclose(y, y_ref, atol=2e-3, rtol=2e-3), "mismatch vs reference (case 1)"

    # Case 2: exercise the tiled / pipelined path (grid of 4, tb multiple of 8).
    x2 = jax.random.normal(kx2, (64, num_seq * input_dims), dtype=jnp.float32)
    y2 = attention_block(x2, wq, wk, wv, batch_tile=16)
    jax.block_until_ready(y2)
    y2_ref = attention_block_ref(x2, wq, wk, wv)
    assert jnp.allclose(y2, y2_ref, atol=2e-3, rtol=2e-3), "mismatch vs reference (case 2)"

    print("KERNEL_OK")
</pallas_src>

<mosaic_0001>
module attributes {stable_mosaic.version = 11 : i64} {
  func.func @_attention_block_kernel(%arg0: i32, %arg1: memref<8x128xf32, #tpu.memory_space<vmem>>, %arg2: memref<128x256xf32, #tpu.memory_space<vmem>>, %arg3: memref<8x32xf32, #tpu.memory_space<vmem>>) attributes {dimension_semantics = [#tpu.dimension_semantics<parallel>], iteration_bounds = array<i64: 1>, scalar_prefetch = 0 : i64, scratch_operands = 0 : i64, tpu.core_type = #tpu.core_type<tc>, window_params = [{transform_indices = @transform_0, window_bounds = array<i64: 8, 128>}, {pipeline_mode = #tpu.pipeline_mode<synchronous>, transform_indices = @transform_1, window_bounds = array<i64: 128, 256>}, {transform_indices = @transform_2, window_bounds = array<i64: 8, 32>}]} {
    %c0 = arith.constant 0 : index
    %c0_0 = arith.constant 0 : index
    %0 = vector.load %arg1[%c0, %c0_0] : memref<8x128xf32, #tpu.memory_space<vmem>>, vector<8x128xf32>
    %c0_1 = arith.constant 0 : index
    %c0_2 = arith.constant 0 : index
    %1 = vector.load %arg2[%c0_1, %c0_2] : memref<128x256xf32, #tpu.memory_space<vmem>>, vector<128x256xf32>
    %cst = arith.constant dense<0.000000e+00> : vector<8x256xf32>
    %2 = tpu.matmul %0, %1, %cst {dimension_numbers = #tpu.dot_dimension_numbers<[1], [0], [0], [1], [0, 0, 1, 1], [], []>} : vector<8x128xf32>, vector<128x256xf32>, vector<8x256xf32> -> vector<8x256xf32>
    %3 = vector.extract_strided_slice %2 {offsets = [0, 0], sizes = [8, 128], strides = [1, 1]} : vector<8x256xf32> to vector<8x128xf32>
    %4 = arith.mulf %0, %3 : vector<8x128xf32>
    %5 = vector.extract_strided_slice %4 {offsets = [0, 0], sizes = [8, 32], strides = [1, 1]} : vector<8x128xf32> to vector<8x32xf32>
    %cst_3 = arith.constant dense<0.000000e+00> : vector<8xf32>
    %6 = vector.multi_reduction <add>, %5, %cst_3 [1] : vector<8x32xf32> to vector<8xf32>
    %7 = vector.shape_cast %6 : vector<8xf32> to vector<8x1xf32>
    %8 = arith.mulf %7, %7 : vector<8x1xf32>
    %9 = vector.extract_strided_slice %4 {offsets = [0, 32], sizes = [8, 32], strides = [1, 1]} : vector<8x128xf32> to vector<8x32xf32>
    %cst_4 = arith.constant dense<0.000000e+00> : vector<8xf32>
    %10 = vector.multi_reduction <add>, %9, %cst_4 [1] : vector<8x32xf32> to vector<8xf32>
    %11 = vector.shape_cast %10 : vector<8xf32> to vector<8x1xf32>
    %12 = arith.mulf %11, %11 : vector<8x1xf32>
    %13 = arith.addf %8, %12 : vector<8x1xf32>
    %14 = vector.extract_strided_slice %4 {offsets = [0, 64], sizes = [8, 32], strides = [1, 1]} : vector<8x128xf32> to vector<8x32xf32>
    %cst_5 = arith.constant dense<0.000000e+00> : vector<8xf32>
    %15 = vector.multi_reduction <add>, %14, %cst_5 [1] : vector<8x32xf32> to vector<8xf32>
    %16 = vector.shape_cast %15 : vector<8xf32> to vector<8x1xf32>
    %17 = arith.mulf %16, %16 : vector<8x1xf32>
    %18 = arith.addf %13, %17 : vector<8x1xf32>
    %19 = vector.extract_strided_slice %4 {offsets = [0, 96], sizes = [8, 32], strides = [1, 1]} : vector<8x128xf32> to vector<8x32xf32>
    %cst_6 = arith.constant dense<0.000000e+00> : vector<8xf32>
    %20 = vector.multi_reduction <add>, %19, %cst_6 [1] : vector<8x32xf32> to vector<8xf32>
    %21 = vector.shape_cast %20 : vector<8xf32> to vector<8x1xf32>
    %22 = arith.mulf %21, %21 : vector<8x1xf32>
    %23 = arith.addf %18, %22 : vector<8x1xf32>
    %24 = math.rsqrt %23 : vector<8x1xf32>
    %cst_7 = arith.constant 0.000000e+00 : f32
    %25 = vector.broadcast %cst_7 : f32 to vector<8x32xf32>
    %26 = vector.extract_strided_slice %2 {offsets = [0, 128], sizes = [8, 32], strides = [1, 1]} : vector<8x256xf32> to vector<8x32xf32>
    %27 = arith.mulf %7, %24 : vector<8x1xf32>
    %28 = vector.broadcast %27 : vector<8x1xf32> to vector<8x32xf32>
    %29 = arith.mulf %28, %26 : vector<8x32xf32>
    %30 = arith.addf %25, %29 : vector<8x32xf32>
    %31 = vector.extract_strided_slice %2 {offsets = [0, 160], sizes = [8, 32], strides = [1, 1]} : vector<8x256xf32> to vector<8x32xf32>
    %32 = arith.mulf %11, %24 : vector<8x1xf32>
    %33 = vector.broadcast %32 : vector<8x1xf32> to vector<8x32xf32>
    %34 = arith.mulf %33, %31 : vector<8x32xf32>
    %35 = arith.addf %30, %34 : vector<8x32xf32>
    %36 = vector.extract_strided_slice %2 {offsets = [0, 192], sizes = [8, 32], strides = [1, 1]} : vector<8x256xf32> to vector<8x32xf32>
    %37 = arith.mulf %16, %24 : vector<8x1xf32>
    %38 = vector.broadcast %37 : vector<8x1xf32> to vector<8x32xf32>
    %39 = arith.mulf %38, %36 : vector<8x32xf32>
    %40 = arith.addf %35, %39 : vector<8x32xf32>
    %41 = vector.extract_strided_slice %2 {offsets = [0, 224], sizes = [8, 32], strides = [1, 1]} : vector<8x256xf32> to vector<8x32xf32>
    %42 = arith.mulf %21, %24 : vector<8x1xf32>
    %43 = vector.broadcast %42 : vector<8x1xf32> to vector<8x32xf32>
    %44 = arith.mulf %43, %41 : vector<8x32xf32>
    %45 = arith.addf %40, %44 : vector<8x32xf32>
    %c0_8 = arith.constant 0 : index
    %c0_9 = arith.constant 0 : index
    %46 = vector.load %arg3[%c0_8, %c0_9] : memref<8x32xf32, #tpu.memory_space<vmem>>, vector<8x32xf32>
    tpu.vector_store %arg3[%c0_8, %c0_9], %45 {strides = array<i32>} : memref<8x32xf32, #tpu.memory_space<vmem>>, vector<8x32xf32>,
    return
  }
  func.func @transform_0(%arg0: i32) -> (i32, i32) {
    %c0_i32 = arith.constant 0 : i32
    %c0_i32_0 = arith.constant 0 : i32
    return %arg0, %c0_i32 : i32, i32
  }
  func.func @transform_1(%arg0: i32) -> (i32, i32) {
    %c0_i32 = arith.constant 0 : i32
    %c0_i32_0 = arith.constant 0 : i32
    %c0_i32_1 = arith.constant 0 : i32
    return %c0_i32, %c0_i32_0 : i32, i32
  }
  func.func @transform_2(%arg0: i32) -> (i32, i32) {
    %c0_i32 = arith.constant 0 : i32
    %c0_i32_0 = arith.constant 0 : i32
    return %arg0, %c0_i32 : i32, i32
  }
}

</mosaic_0001>

<llo_original>
// kernel: attention_block.1
$region0: #{attention_block.1}
  #allocation0 [shape = 'u32[]', space=smem, size = 0x4, offset = 0x4, fixed_abs, tag = 'smem constant byte address 0x4 - core index']
  #allocation1 [shape = 'u32[72,128]{1,0:T(1,128)}', space=vmem, size = 0x9000, scoped, tag = 'internal scratch']
  %s0 = inlined_call_operand.vmem [shape: f32[8,128], index: 0, kind: input, shape index: {}]
  %s1 = inlined_call_operand.vmem [shape: f32[128,256], index: 1, kind: input, shape index: {}]
  %s2 = inlined_call_operand.hbm [shape: f32[8,32], index: 2, kind: output, shape index: {}]
  %s3 = sld [smem:[#allocation0]]
  $region18: #{attention_block.1} parent=0
    _
  %s5 = ssub.s32 1, %s3
  %s6 = scalar_select 0, %s5, %s3
  $region1: #{attention_block.1} parent=0
    #allocation2 [shape = 'u8[4096]{0}', space=vmem, size = 0x1000, scoped, tag = 'output window, operand 0, single buffered']
    #allocation3 [shape = 's32[1]{0}', space=sflag, size = 0x4, scoped, tag = 'scoped memory for attention_block.1']
    %7 = vsyncpa [#allocation3], 0
    // Predicated region
    $region2: #{attention_block.1} parent=1 // pred_check
      _
    $region3: #{attention_block.1} parent=1 // pred_check_branch
      %9 = sbr.rel (0) target = $region5
    $region4: #{attention_block.1} parent=1 // pred_region
      _
    $region5: #{attention_block.1} parent=1 // pred_fallthru
      _
    // Predicated region
    $region6: #{attention_block.1} parent=1 // pred_check
      _
    $region7: #{attention_block.1} parent=1 // pred_check_branch
      %11 = sbr.rel (0) target = $region9
    $region8: #{attention_block.1} parent=1 // pred_region
      _
    $region9: #{attention_block.1} parent=1 // pred_fallthru
      _
    %v12 = vld [vmem:[%s0] sm:$0xff]
    %v13 = vld [vmem:[%s1] sm:$0xff]
    %v14 = vld [vmem:[%s1 + $0x8] sm:$0xff]
    %v15 = vld [vmem:[%s1 + $0x10] sm:$0xff]
    %v16 = vld [vmem:[%s1 + $0x18] sm:$0xff]
    %v17 = vld [vmem:[%s1 + $0x20] sm:$0xff]
    %v18 = vld [vmem:[%s1 + $0x28] sm:$0xff]
    %v19 = vld [vmem:[%s1 + $0x30] sm:$0xff]
    %v20 = vld [vmem:[%s1 + $0x38] sm:$0xff]
    %v21 = vld [vmem:[%s1 + $0x40] sm:$0xff]
    %v22 = vld [vmem:[%s1 + $0x48] sm:$0xff]
    %v23 = vld [vmem:[%s1 + $0x50] sm:$0xff]
    %v24 = vld [vmem:[%s1 + $0x58] sm:$0xff]
    %v25 = vld [vmem:[%s1 + $0x60] sm:$0xff]
    %v26 = vld [vmem:[%s1 + $0x68] sm:$0xff]
    %v27 = vld [vmem:[%s1 + $0x70] sm:$0xff]
    %v28 = vld [vmem:[%s1 + $0x78] sm:$0xff]
    %v29 = vld [vmem:[%s1 + $0x80] sm:$0xff]
    %v30 = vld [vmem:[%s1 + $0x88] sm:$0xff]
    %v31 = vld [vmem:[%s1 + $0x90] sm:$0xff]
    %v32 = vld [vmem:[%s1 + $0x98] sm:$0xff]
    %v33 = vld [vmem:[%s1 + $0xa0] sm:$0xff]
    %v34 = vld [vmem:[%s1 + $0xa8] sm:$0xff]
    %v35 = vld [vmem:[%s1 + $0xb0] sm:$0xff]
    %v36 = vld [vmem:[%s1 + $0xb8] sm:$0xff]
    %v37 = vld [vmem:[%s1 + $0xc0] sm:$0xff]
    %v38 = vld [vmem:[%s1 + $0xc8] sm:$0xff]
    %v39 = vld [vmem:[%s1 + $0xd0] sm:$0xff]
    %v40 = vld [vmem:[%s1 + $0xd8] sm:$0xff]
    %v41 = vld [vmem:[%s1 + $0xe0] sm:$0xff]
    %v42 = vld [vmem:[%s1 + $0xe8] sm:$0xff]
    %v43 = vld [vmem:[%s1 + $0xf0] sm:$0xff]
    %v44 = vld [vmem:[%s1 + $0xf8] sm:$0xff]
    %45 = vmatpush.msra.mxu0 %v43
    %46 = vmatpush.msra.mxu0 %v41
    %47 = vmatpush.msra.mxu0 %v39
    %48 = vmatpush.msra.mxu0 %v37
    %49 = vmatpush.msra.mxu0 %v35
    %50 = vmatpush.msra.mxu0 %v33
    %51 = vmatpush.msra.mxu0 %v31
    %52 = vmatpush.msra.mxu0 %v29
    %53 = vmatpush.msra.mxu0 %v27
    %54 = vmatpush.msra.mxu0 %v25
    %55 = vmatpush.msra.mxu0 %v23
    %56 = vmatpush.msra.mxu0 %v21
    %57 = vmatpush.msra.mxu0 %v19
    %58 = vmatpush.msra.mxu0 %v17
    %59 = vmatpush.msra.mxu0 %v15
    %60 = vmatpush.msra.mxu0 %v13
    %61 = vmatmul.f32.gmra.mxu0 %v12
    %v62 = vpop.f32.mrf.mxu0
    %v63 = vadd.f32 0.0, %v62
    %64 = vdwg.mxu0
    %65 = vmatpush.msra.mxu0 %v44
    %66 = vmatpush.msra.mxu0 %v42
    %67 = vmatpush.msra.mxu0 %v40
    %68 = vmatpush.msra.mxu0 %v38
    %69 = vmatpush.msra.mxu0 %v36
    %70 = vmatpush.msra.mxu0 %v34
    %71 = vmatpush.msra.mxu0 %v32
    %72 = vmatpush.msra.mxu0 %v30
    %73 = vmatpush.msra.mxu0 %v28
    %74 = vmatpush.msra.mxu0 %v26
    %75 = vmatpush.msra.mxu0 %v24
    %76 = vmatpush.msra.mxu0 %v22
    %77 = vmatpush.msra.mxu0 %v20
    %78 = vmatpush.msra.mxu0 %v18
    %79 = vmatpush.msra.mxu0 %v16
    %80 = vmatpush.msra.mxu0 %v14
    %81 = vmatmul.f32.gmra.mxu0 %v12
    %v82 = vpop.f32.mrf.mxu0
    %v83 = vadd.f32 0.0, %v82
    %84 = vdwg.mxu0
    %v85 = vmul.f32 %v12, %v63
    %vm86 = vcmask 261120
    %v87 = vsel %vm86, %v85, 0.0
    %88 = vadd.xlane.f32.xlu0 %v87
    %v89 = vpop.xlane.xlu0 %88
    %v90 = vmul.f32 %v89, %v89
    %92 = vrot.lane.b32.xlu0 %v85, 96
    %v93 = vpop.permute.xlu0 %92
    %v95 = vsel %vm86, %v93, 0.0
    %96 = vadd.xlane.f32.xlu0 %v95
    %v97 = vpop.xlane.xlu0 %96
    %v98 = vmul.f32 %v97, %v97
    %v99 = vadd.f32 %v90, %v98
    %100 = vrot.lane.b32.xlu0 %v85, 64
    %v101 = vpop.permute.xlu0 %100
    %v103 = vsel %vm86, %v101, 0.0
    %104 = vadd.xlane.f32.xlu0 %v103
    %v105 = vpop.xlane.xlu0 %104
    %v106 = vmul.f32 %v105, %v105
    %v107 = vadd.f32 %v99, %v106
    %108 = vrot.lane.b32.xlu0 %v85, 32
    %v109 = vpop.permute.xlu0 %108
    %v111 = vsel %vm86, %v109, 0.0
    %112 = vadd.xlane.f32.xlu0 %v111
    %v113 = vpop.xlane.xlu0 %112
    %v114 = vmul.f32 %v113, %v113
    %v115 = vadd.f32 %v107, %v114
    %v116 = vrsqrt.pop %v115
    %v117 = vmul.f32 %v116, %v115
    %v118 = vmul.f32 %v117, %v116
    %v119 = vmul.f32 0.5, %v118
    %v120 = vsub.f32 1.5, %v119
    %v121 = vmul.f32 %v116, %v120
    %vm122 = vweird.f32 %v115
    %vm123 = vweird.f32 %v116
    %vm124 = vmor %vm122, %vm123
    %v125 = vsel %vm124, %v116, %v121
    %v126 = vmul.f32 %v89, %v125
    %v127 = vmul.f32 %v126, %v83
    %v128 = vadd.f32 %v127, 0.0
    %v129 = vmul.f32 %v97, %v125
    %v130 = vmul.f32 %v129, %v83
    %132 = vrot.lane.b32.xlu0 %v130, 96
    %v133 = vpop.permute.xlu0 %132
    %v135 = vadd.f32 %v128, %v133
    %v136 = vmul.f32 %v105, %v125
    %v137 = vmul.f32 %v136, %v83
    %139 = vrot.lane.b32.xlu0 %v137, 64
    %v140 = vpop.permute.xlu0 %139
    %v142 = vadd.f32 %v135, %v140
    %v143 = vmul.f32 %v113, %v125
    %v144 = vmul.f32 %v143, %v83
    %146 = vrot.lane.b32.xlu0 %v144, 32
    %v147 = vpop.permute.xlu0 %146
    %v149 = vadd.f32 %v142, %v147
    %150 = vst.msk [vmem:[#allocation2] sm:$0xff] %vm86, %v149
    // Predicated region
    $region10: #{attention_block.1} parent=1 // pred_check
      _
    $region11: #{attention_block.1} parent=1 // pred_check_branch
      %152 = sbr.rel (0) target = $region13
    $region12: #{attention_block.1} parent=1 // pred_region
      %154 = vsyncadd [#allocation3], 0
      %s156 = sshll.u32 [#allocation2], 4
      %s157 = int_to_ptr.vmem [resolvable:$true] %s156
      %s158 = sshll.u32 %s2, 4
      %s159 = int_to_ptr.hbm [resolvable:$true] %s158
      %161 = dma.vmem_to_hbm [thread:$0]  %s157, 128, %s159, [#allocation3]
    $region13: #{attention_block.1} parent=1 // pred_fallthru
      _
    // Predicated region
    $region14: #{attention_block.1} parent=1 // pred_check
      _
    $region15: #{attention_block.1} parent=1 // pred_check_branch
      %163 = sbr.rel (0) target = $region17
    $region16: #{attention_block.1} parent=1 // pred_region
      %165 = dma.done [#allocation3], 128
    $region17: #{attention_block.1} parent=1 // pred_fallthru
      _
    %166 = vsyncpa [#allocation3], 1

</llo_original>
